<compile_context>
chip_gen: v5e
topology: v5e:2x2
jax: 0.10.0
libtpu: 0.0.40
codegen_flags: <defaults>
</compile_context>

<pallas_src>
import math
import functools

import jax
import jax.numpy as jnp
from jax.experimental import pallas as pl
from jax.experimental.pallas import tpu as pltpu


# ----------------------------------------------------------------------------
# Fused kernel: projections + per-head attention + output projection.
#   grid = (B, S // Tq); one (batch, query-tile) per step.
#   K/V projections live in VMEM scratch, computed once per batch element.
# ----------------------------------------------------------------------------
def _mha_fused_kernel(q_ref, k_ref, v_ref,
                      wq_ref, bq_ref, wk_ref, bk_ref, wv_ref, bv_ref,
                      wo_ref, bo_ref,
                      o_ref,
                      kp_ref, vp_ref,
                      *, num_heads, head_dim, scale, causal, q_tile):
    qi = pl.program_id(1)
    mm_dtype = kp_ref.dtype            # matmul operand dtype (f32 or bf16)
    S = kp_ref.shape[0]

    # ---- K/V projections: once per batch element, reused by every q tile ----
    @pl.when(qi == 0)
    def _():
        k = k_ref[0]                   # [S, D]
        v = v_ref[0]
        kp_ref[...] = (jnp.dot(k, wk_ref[...],
                               preferred_element_type=jnp.float32)
                       + bk_ref[...]).astype(mm_dtype)
        vp_ref[...] = (jnp.dot(v, wv_ref[...],
                               preferred_element_type=jnp.float32)
                       + bv_ref[...]).astype(mm_dtype)

    # ---- Q projection for this tile (full-width [Tq,D]@[D,D] MXU matmul) ----
    q = q_ref[0]                       # [Tq, D]
    q_p = jnp.dot(q, wq_ref[...], preferred_element_type=jnp.float32) + bq_ref[...]
    # Fold the 1/sqrt(d_model) scale into q_p (matches the reference, which
    # scales by d_model rather than head_dim -- intentional, do not "fix").
    q_p = (q_p * scale).astype(mm_dtype)

    k_p = kp_ref[...]                  # [S, D]
    v_p = vp_ref[...]

    if causal:
        q0 = qi * q_tile
        row = q0 + jax.lax.broadcasted_iota(jnp.int32, (q_tile, S), 0)
        col = jax.lax.broadcasted_iota(jnp.int32, (q_tile, S), 1)
        causal_ok = col <= row         # diagonal always unmasked -> no NaN rows

    # ---- per-head attention (static unroll; small H) ----
    outs = []
    for h in range(num_heads):
        lo = h * head_dim
        hi = lo + head_dim
        qh = q_p[:, lo:hi]             # [Tq, Dh]
        kh = k_p[:, lo:hi]             # [S,  Dh]
        vh = v_p[:, lo:hi]

        # Contract last dims directly (no explicit transpose / XLU op).
        s = jax.lax.dot_general(qh, kh, (((1,), (1,)), ((), ())),
                                preferred_element_type=jnp.float32)  # [Tq, S]
        if causal:
            s = jnp.where(causal_ok, s, -jnp.inf)

        # Numerically-stable softmax, all in f32; exact reciprocal on [Tq,1].
        m = jnp.max(s, axis=-1, keepdims=True)
        e = jnp.exp(s - m)
        denom = jnp.sum(e, axis=-1, keepdims=True)
        inv = 1.0 / denom
        w = (e * inv).astype(mm_dtype)

        outs.append(jnp.dot(w, vh, preferred_element_type=jnp.float32))  # [Tq, Dh]

    # ---- lane-dense concat + fused output projection, lane-dense store ----
    concat = jnp.concatenate(outs, axis=-1).astype(wo_ref.dtype)          # [Tq, D]
    y = jnp.dot(concat, wo_ref[...], preferred_element_type=jnp.float32) + bo_ref[...]
    o_ref[0] = y.astype(o_ref.dtype)


# ----------------------------------------------------------------------------
# Helpers
# ----------------------------------------------------------------------------
def _pick_q_tile(S, cap=256):
    """Largest 8-aligned divisor of S that is <= cap (else full S)."""
    if S <= cap:
        return S
    for t in range(cap, 7, -1):
        if S % t == 0 and t % 8 == 0:
            return t
    return S


def _vmem_limit_bytes():
    """~75% of physical VMEM (48 MiB on v7x, 96 MiB on v5e/v6e), with fallback."""
    try:
        cap = pltpu.get_tpu_info().vmem_capacity_bytes
        return int(min(cap * 3 // 4, 112 * 1024 * 1024))
    except Exception:
        return 48 * 1024 * 1024


def prepare_fused_params(params, dtype=jnp.float32):
    """Fuse per-head weights ONCE, outside the hot path.

    [H, D, Dh] -> [D, H*Dh] (column block h == head h's weight);
    biases [H, 1, Dh] -> [1, H*Dh].  Weights are stored in the matmul dtype,
    biases stay f32 (added post-accumulation).
    """
    H, D, Dh = params["wq"].shape

    def fuse_w(w):
        return jnp.transpose(w, (1, 0, 2)).reshape(D, H * Dh).astype(dtype)

    def fuse_b(b):
        return b.reshape(1, H * Dh).astype(jnp.float32)

    return {
        "wq": fuse_w(params["wq"]), "bq": fuse_b(params["bq"]),
        "wk": fuse_w(params["wk"]), "bk": fuse_b(params["bk"]),
        "wv": fuse_w(params["wv"]), "bv": fuse_b(params["bv"]),
        "wo": params["wo"].astype(dtype),
        "bo": params["bo"].astype(jnp.float32),
    }


# ----------------------------------------------------------------------------
# Wrapper
# ----------------------------------------------------------------------------
def multi_head_attention(Q, K, V, fused, *, num_heads, mask=False,
                         matmul_dtype=jnp.float32, q_tile=None):
    """Q, K, V: [B, S, D] float32. `fused` from prepare_fused_params()."""
    B, S, D = Q.shape
    H = num_heads
    Dh = D // H
    scale = 1.0 / math.sqrt(D)          # reference divides by sqrt(d_model)

    Tq = q_tile if q_tile is not None else _pick_q_tile(S)
    assert S % Tq == 0, "q_tile must divide S"

    # TODO(synk): at toy D (=32 here) the output tile is not lane-dense and
    # Dh (=8) underfills the MXU; pad D/Dh to 128 multiples for real shapes.
    Qc = Q.astype(matmul_dtype)
    Kc = K.astype(matmul_dtype)
    Vc = V.astype(matmul_dtype)

    kernel = functools.partial(_mha_fused_kernel,
                               num_heads=H, head_dim=Dh, scale=scale,
                               causal=mask, q_tile=Tq)

    q_spec = pl.BlockSpec((1, Tq, D), lambda b, qi: (b, qi, 0))
    kv_spec = pl.BlockSpec((1, S, D), lambda b, qi: (b, 0, 0))   # const in qi
    w_spec = pl.BlockSpec((D, D), lambda b, qi: (0, 0))          # resident
    b_spec = pl.BlockSpec((1, D), lambda b, qi: (0, 0))
    out_spec = pl.BlockSpec((1, Tq, D), lambda b, qi: (b, qi, 0))

    out = pl.pallas_call(
        kernel,
        out_shape=jax.ShapeDtypeStruct((B, S, D), jnp.float32),
        grid_spec=pltpu.PrefetchScalarGridSpec(
            num_scalar_prefetch=0,
            grid=(B, S // Tq),
            in_specs=[q_spec, kv_spec, kv_spec,
                      w_spec, b_spec, w_spec, b_spec, w_spec, b_spec,
                      w_spec, b_spec],
            out_specs=out_spec,
            scratch_shapes=[pltpu.VMEM((S, D), matmul_dtype),   # K projection
                            pltpu.VMEM((S, D), matmul_dtype)],  # V projection
        ),
        compiler_params=pltpu.CompilerParams(
            # batch axis parallel (megacore on v7x); query axis carries the
            # K/V-projection scratch so it must stay "arbitrary".
            dimension_semantics=("parallel", "arbitrary"),
            vmem_limit_bytes=_vmem_limit_bytes()),
    )(Qc, Kc, Vc,
      fused["wq"], fused["bq"], fused["wk"], fused["bk"],
      fused["wv"], fused["bv"], fused["wo"], fused["bo"])

    return out


# ----------------------------------------------------------------------------
# Pure-JAX reference (mirrors the PyTorch module) for correctness checks
# ----------------------------------------------------------------------------
def reference_mha(Q, K, V, params, *, num_heads, mask=False):
    B, S, D = Q.shape
    scale = 1.0 / math.sqrt(D)
    outs = []
    for h in range(num_heads):
        q_p = Q @ params["wq"][h] + params["bq"][h]
        k_p = K @ params["wk"][h] + params["bk"][h]
        v_p = V @ params["wv"][h] + params["bv"][h]
        scores = q_p @ jnp.swapaxes(k_p, -2, -1) * scale
        if mask:
            tri = jnp.tril(jnp.ones((S, S)))
            scores = jnp.where(tri == 0, -jnp.inf, scores)
        w = jax.nn.softmax(scores, axis=-1)
        outs.append(w @ v_p)
    concat = jnp.concatenate(outs, axis=-1)
    return concat @ params["wo"] + params["bo"]


# ----------------------------------------------------------------------------
# Deterministic parameter init + run
# ----------------------------------------------------------------------------
def init_params(key, d_model, num_heads):
    H = num_heads
    Dh = d_model // H
    ks = jax.random.split(key, 8)
    lim = 1.0 / math.sqrt(d_model)     # PyTorch Linear default uniform bound
    return {
        "wq": jax.random.uniform(ks[0], (H, d_model, Dh), jnp.float32, -lim, lim),
        "bq": jax.random.uniform(ks[1], (H, 1, Dh), jnp.float32, -lim, lim),
        "wk": jax.random.uniform(ks[2], (H, d_model, Dh), jnp.float32, -lim, lim),
        "bk": jax.random.uniform(ks[3], (H, 1, Dh), jnp.float32, -lim, lim),
        "wv": jax.random.uniform(ks[4], (H, d_model, Dh), jnp.float32, -lim, lim),
        "bv": jax.random.uniform(ks[5], (H, 1, Dh), jnp.float32, -lim, lim),
        "wo": jax.random.uniform(ks[6], (d_model, d_model), jnp.float32, -lim, lim),
        "bo": jax.random.uniform(ks[7], (1, d_model), jnp.float32, -lim, lim),
    }


if __name__ == "__main__":
    B, S, D, H = 2, 8, 32, 4   # batch, seq, d_model, num_heads

    key = jax.random.PRNGKey(0)
    k1, k2, k3, kp = jax.random.split(key, 4)
    Q = jax.random.normal(k1, (B, S, D), jnp.float32)
    K = jax.random.normal(k2, (B, S, D), jnp.float32)
    V = jax.random.normal(k3, (B, S, D), jnp.float32)
    params = init_params(kp, D, H)

    # --- f32 path: exact parity with the reference (no mask) ---
    fused_f32 = prepare_fused_params(params, jnp.float32)
    out = multi_head_attention(Q, K, V, fused_f32, num_heads=H, mask=False,
                               matmul_dtype=jnp.float32)
    out = jax.block_until_ready(out)
    ref = reference_mha(Q, K, V, params, num_heads=H, mask=False)
    assert out.shape == (B, S, D)
    assert jnp.allclose(out, ref, atol=1e-4, rtol=1e-4), "f32 mismatch vs reference"

    # --- f32 path, causal mask ---
    out_m = multi_head_attention(Q, K, V, fused_f32, num_heads=H, mask=True,
                                 matmul_dtype=jnp.float32)
    out_m = jax.block_until_ready(out_m)
    ref_m = reference_mha(Q, K, V, params, num_heads=H, mask=True)
    assert jnp.allclose(out_m, ref_m, atol=1e-4, rtol=1e-4), "masked mismatch vs reference"

    # --- bf16 matmul-operand path (f32 accumulation / f32 softmax math) ---
    fused_bf16 = prepare_fused_params(params, jnp.bfloat16)
    out_bf = multi_head_attention(Q, K, V, fused_bf16, num_heads=H, mask=False,
                                  matmul_dtype=jnp.bfloat16)
    out_bf = jax.block_until_ready(out_bf)
    assert jnp.allclose(out_bf, ref, atol=6e-2, rtol=6e-2), "bf16 path mismatch vs reference"

    print("KERNEL_OK")
</pallas_src>

<mosaic_0001>
module attributes {stable_mosaic.version = 11 : i64} {
  func.func @_mha_fused_kernel(%arg0: i32, %arg1: i32, %arg2: memref<1x8x32xf32, #tpu.memory_space<vmem>>, %arg3: memref<1x8x32xf32, #tpu.memory_space<vmem>>, %arg4: memref<1x8x32xf32, #tpu.memory_space<vmem>>, %arg5: memref<32x32xf32, #tpu.memory_space<vmem>>, %arg6: memref<1x32xf32, #tpu.memory_space<vmem>>, %arg7: memref<32x32xf32, #tpu.memory_space<vmem>>, %arg8: memref<1x32xf32, #tpu.memory_space<vmem>>, %arg9: memref<32x32xf32, #tpu.memory_space<vmem>>, %arg10: memref<1x32xf32, #tpu.memory_space<vmem>>, %arg11: memref<32x32xf32, #tpu.memory_space<vmem>>, %arg12: memref<1x32xf32, #tpu.memory_space<vmem>>, %arg13: memref<1x8x32xf32, #tpu.memory_space<vmem>>, %arg14: memref<8x32xf32, #tpu.memory_space<vmem>>, %arg15: memref<8x32xf32, #tpu.memory_space<vmem>>) attributes {dimension_semantics = [#tpu.dimension_semantics<parallel>, #tpu.dimension_semantics<arbitrary>], iteration_bounds = array<i64: 2, 1>, scalar_prefetch = 0 : i64, scratch_operands = 2 : i64, tpu.core_type = #tpu.core_type<tc>, window_params = [{transform_indices = @transform_0, window_bounds = array<i64: 1, 8, 32>}, {transform_indices = @transform_1, window_bounds = array<i64: 1, 8, 32>}, {transform_indices = @transform_2, window_bounds = array<i64: 1, 8, 32>}, {pipeline_mode = #tpu.pipeline_mode<synchronous>, transform_indices = @transform_3, window_bounds = array<i64: 32, 32>}, {pipeline_mode = #tpu.pipeline_mode<synchronous>, transform_indices = @transform_4, window_bounds = array<i64: 1, 32>}, {pipeline_mode = #tpu.pipeline_mode<synchronous>, transform_indices = @transform_5, window_bounds = array<i64: 32, 32>}, {pipeline_mode = #tpu.pipeline_mode<synchronous>, transform_indices = @transform_6, window_bounds = array<i64: 1, 32>}, {pipeline_mode = #tpu.pipeline_mode<synchronous>, transform_indices = @transform_7, window_bounds = array<i64: 32, 32>}, {pipeline_mode = #tpu.pipeline_mode<synchronous>, transform_indices = @transform_8, window_bounds = array<i64: 1, 32>}, {pipeline_mode = #tpu.pipeline_mode<synchronous>, transform_indices = @transform_9, window_bounds = array<i64: 32, 32>}, {pipeline_mode = #tpu.pipeline_mode<synchronous>, transform_indices = @transform_10, window_bounds = array<i64: 1, 32>}, {transform_indices = @transform_11, window_bounds = array<i64: 1, 8, 32>}]} {
    %c0_i32 = arith.constant 0 : i32
    %0 = arith.cmpi eq, %arg1, %c0_i32 : i32
    %1 = arith.extui %0 : i1 to i32
    %c0_i32_0 = arith.constant 0 : i32
    %2 = arith.cmpi ne, %1, %c0_i32_0 : i32
    scf.if %2 {
      %c0_40 = arith.constant 0 : index
      %c0_41 = arith.constant 0 : index
      %c0_42 = arith.constant 0 : index
      %87 = vector.load %arg3[%c0_40, %c0_41, %c0_42] : memref<1x8x32xf32, #tpu.memory_space<vmem>>, vector<1x8x32xf32>
      %88 = vector.shape_cast %87 : vector<1x8x32xf32> to vector<8x32xf32>
      %c0_43 = arith.constant 0 : index
      %c0_44 = arith.constant 0 : index
      %c0_45 = arith.constant 0 : index
      %89 = vector.load %arg4[%c0_43, %c0_44, %c0_45] : memref<1x8x32xf32, #tpu.memory_space<vmem>>, vector<1x8x32xf32>
      %90 = vector.shape_cast %89 : vector<1x8x32xf32> to vector<8x32xf32>
      %c0_46 = arith.constant 0 : index
      %c0_47 = arith.constant 0 : index
      %91 = vector.load %arg7[%c0_46, %c0_47] : memref<32x32xf32, #tpu.memory_space<vmem>>, vector<32x32xf32>
      %cst_48 = arith.constant dense<0.000000e+00> : vector<8x32xf32>
      %92 = tpu.matmul %88, %91, %cst_48 {dimension_numbers = #tpu.dot_dimension_numbers<[1], [0], [0], [1], [0, 0, 1, 1], [], []>} : vector<8x32xf32>, vector<32x32xf32>, vector<8x32xf32> -> vector<8x32xf32>
      %c0_49 = arith.constant 0 : index
      %c0_50 = arith.constant 0 : index
      %93 = vector.load %arg8[%c0_49, %c0_50] : memref<1x32xf32, #tpu.memory_space<vmem>>, vector<1x32xf32>
      %94 = vector.broadcast %93 : vector<1x32xf32> to vector<8x32xf32>
      %95 = arith.addf %92, %94 : vector<8x32xf32>
      %c0_51 = arith.constant 0 : index
      %c0_52 = arith.constant 0 : index
      %96 = vector.load %arg14[%c0_51, %c0_52] : memref<8x32xf32, #tpu.memory_space<vmem>>, vector<8x32xf32>
      tpu.vector_store %arg14[%c0_51, %c0_52], %95 {strides = array<i32>} : memref<8x32xf32, #tpu.memory_space<vmem>>, vector<8x32xf32>,
      %c0_53 = arith.constant 0 : index
      %c0_54 = arith.constant 0 : index
      %97 = vector.load %arg9[%c0_53, %c0_54] : memref<32x32xf32, #tpu.memory_space<vmem>>, vector<32x32xf32>
      %cst_55 = arith.constant dense<0.000000e+00> : vector<8x32xf32>
      %98 = tpu.matmul %90, %97, %cst_55 {dimension_numbers = #tpu.dot_dimension_numbers<[1], [0], [0], [1], [0, 0, 1, 1], [], []>} : vector<8x32xf32>, vector<32x32xf32>, vector<8x32xf32> -> vector<8x32xf32>
      %c0_56 = arith.constant 0 : index
      %c0_57 = arith.constant 0 : index
      %99 = vector.load %arg10[%c0_56, %c0_57] : memref<1x32xf32, #tpu.memory_space<vmem>>, vector<1x32xf32>
      %100 = vector.broadcast %99 : vector<1x32xf32> to vector<8x32xf32>
      %101 = arith.addf %98, %100 : vector<8x32xf32>
      %c0_58 = arith.constant 0 : index
      %c0_59 = arith.constant 0 : index
      %102 = vector.load %arg15[%c0_58, %c0_59] : memref<8x32xf32, #tpu.memory_space<vmem>>, vector<8x32xf32>
      tpu.vector_store %arg15[%c0_58, %c0_59], %101 {strides = array<i32>} : memref<8x32xf32, #tpu.memory_space<vmem>>, vector<8x32xf32>,
    } else {
    }
    %c0 = arith.constant 0 : index
    %c0_1 = arith.constant 0 : index
    %c0_2 = arith.constant 0 : index
    %3 = vector.load %arg2[%c0, %c0_1, %c0_2] : memref<1x8x32xf32, #tpu.memory_space<vmem>>, vector<1x8x32xf32>
    %4 = vector.shape_cast %3 : vector<1x8x32xf32> to vector<8x32xf32>
    %c0_3 = arith.constant 0 : index
    %c0_4 = arith.constant 0 : index
    %5 = vector.load %arg5[%c0_3, %c0_4] : memref<32x32xf32, #tpu.memory_space<vmem>>, vector<32x32xf32>
    %cst = arith.constant dense<0.000000e+00> : vector<8x32xf32>
    %6 = tpu.matmul %4, %5, %cst {dimension_numbers = #tpu.dot_dimension_numbers<[1], [0], [0], [1], [0, 0, 1, 1], [], []>} : vector<8x32xf32>, vector<32x32xf32>, vector<8x32xf32> -> vector<8x32xf32>
    %c0_5 = arith.constant 0 : index
    %c0_6 = arith.constant 0 : index
    %7 = vector.load %arg6[%c0_5, %c0_6] : memref<1x32xf32, #tpu.memory_space<vmem>>, vector<1x32xf32>
    %8 = vector.broadcast %7 : vector<1x32xf32> to vector<8x32xf32>
    %9 = arith.addf %6, %8 : vector<8x32xf32>
    %cst_7 = arith.constant 0.176776692 : f32
    %10 = vector.broadcast %cst_7 : f32 to vector<8x32xf32>
    %11 = arith.mulf %9, %10 : vector<8x32xf32>
    %c0_8 = arith.constant 0 : index
    %c0_9 = arith.constant 0 : index
    %12 = vector.load %arg14[%c0_8, %c0_9] : memref<8x32xf32, #tpu.memory_space<vmem>>, vector<8x32xf32>
    %c0_10 = arith.constant 0 : index
    %c0_11 = arith.constant 0 : index
    %13 = vector.load %arg15[%c0_10, %c0_11] : memref<8x32xf32, #tpu.memory_space<vmem>>, vector<8x32xf32>
    %14 = vector.extract_strided_slice %11 {offsets = [0, 0], sizes = [8, 8], strides = [1, 1]} : vector<8x32xf32> to vector<8x8xf32>
    %15 = vector.extract_strided_slice %12 {offsets = [0, 0], sizes = [8, 8], strides = [1, 1]} : vector<8x32xf32> to vector<8x8xf32>
    %16 = vector.extract_strided_slice %13 {offsets = [0, 0], sizes = [8, 8], strides = [1, 1]} : vector<8x32xf32> to vector<8x8xf32>
    %cst_12 = arith.constant dense<0.000000e+00> : vector<8x8xf32>
    %17 = tpu.matmul %14, %15, %cst_12 {dimension_numbers = #tpu.dot_dimension_numbers<[1], [1], [0], [0], [0, 0, 1, 0], [], []>} : vector<8x8xf32>, vector<8x8xf32>, vector<8x8xf32> -> vector<8x8xf32>
    %cst_13 = arith.constant dense<0xFF800000> : vector<8xf32>
    %18 = vector.multi_reduction <maximumf>, %17, %cst_13 [1] : vector<8x8xf32> to vector<8xf32>
    %19 = vector.shape_cast %18 : vector<8xf32> to vector<8x1xf32>
    %20 = vector.broadcast %19 : vector<8x1xf32> to vector<8x8xf32>
    %21 = arith.subf %17, %20 : vector<8x8xf32>
    %22 = math.exp %21 : vector<8x8xf32>
    %cst_14 = arith.constant dense<0.000000e+00> : vector<8xf32>
    %23 = vector.multi_reduction <add>, %22, %cst_14 [1] : vector<8x8xf32> to vector<8xf32>
    %24 = vector.shape_cast %23 : vector<8xf32> to vector<8x1xf32>
    %cst_15 = arith.constant 1.000000e+00 : f32
    %25 = vector.broadcast %cst_15 : f32 to vector<8x1xf32>
    %26 = arith.divf %25, %24 : vector<8x1xf32>
    %27 = vector.broadcast %26 : vector<8x1xf32> to vector<8x8xf32>
    %28 = arith.mulf %22, %27 : vector<8x8xf32>
    %cst_16 = arith.constant dense<0.000000e+00> : vector<8x8xf32>
    %29 = tpu.matmul %28, %16, %cst_16 {dimension_numbers = #tpu.dot_dimension_numbers<[1], [0], [0], [1], [0, 0, 1, 1], [], []>} : vector<8x8xf32>, vector<8x8xf32>, vector<8x8xf32> -> vector<8x8xf32>
    %30 = vector.extract_strided_slice %11 {offsets = [0, 8], sizes = [8, 8], strides = [1, 1]} : vector<8x32xf32> to vector<8x8xf32>
    %31 = vector.extract_strided_slice %12 {offsets = [0, 8], sizes = [8, 8], strides = [1, 1]} : vector<8x32xf32> to vector<8x8xf32>
    %32 = vector.extract_strided_slice %13 {offsets = [0, 8], sizes = [8, 8], strides = [1, 1]} : vector<8x32xf32> to vector<8x8xf32>
    %cst_17 = arith.constant dense<0.000000e+00> : vector<8x8xf32>
    %33 = tpu.matmul %30, %31, %cst_17 {dimension_numbers = #tpu.dot_dimension_numbers<[1], [1], [0], [0], [0, 0, 1, 0], [], []>} : vector<8x8xf32>, vector<8x8xf32>, vector<8x8xf32> -> vector<8x8xf32>
    %cst_18 = arith.constant dense<0xFF800000> : vector<8xf32>
    %34 = vector.multi_reduction <maximumf>, %33, %cst_18 [1] : vector<8x8xf32> to vector<8xf32>
    %35 = vector.shape_cast %34 : vector<8xf32> to vector<8x1xf32>
    %36 = vector.broadcast %35 : vector<8x1xf32> to vector<8x8xf32>
    %37 = arith.subf %33, %36 : vector<8x8xf32>
    %38 = math.exp %37 : vector<8x8xf32>
    %cst_19 = arith.constant dense<0.000000e+00> : vector<8xf32>
    %39 = vector.multi_reduction <add>, %38, %cst_19 [1] : vector<8x8xf32> to vector<8xf32>
    %40 = vector.shape_cast %39 : vector<8xf32> to vector<8x1xf32>
    %cst_20 = arith.constant 1.000000e+00 : f32
    %41 = vector.broadcast %cst_20 : f32 to vector<8x1xf32>
    %42 = arith.divf %41, %40 : vector<8x1xf32>
    %43 = vector.broadcast %42 : vector<8x1xf32> to vector<8x8xf32>
    %44 = arith.mulf %38, %43 : vector<8x8xf32>
    %cst_21 = arith.constant dense<0.000000e+00> : vector<8x8xf32>
    %45 = tpu.matmul %44, %32, %cst_21 {dimension_numbers = #tpu.dot_dimension_numbers<[1], [0], [0], [1], [0, 0, 1, 1], [], []>} : vector<8x8xf32>, vector<8x8xf32>, vector<8x8xf32> -> vector<8x8xf32>
    %46 = vector.extract_strided_slice %11 {offsets = [0, 16], sizes = [8, 8], strides = [1, 1]} : vector<8x32xf32> to vector<8x8xf32>
    %47 = vector.extract_strided_slice %12 {offsets = [0, 16], sizes = [8, 8], strides = [1, 1]} : vector<8x32xf32> to vector<8x8xf32>
    %48 = vector.extract_strided_slice %13 {offsets = [0, 16], sizes = [8, 8], strides = [1, 1]} : vector<8x32xf32> to vector<8x8xf32>
    %cst_22 = arith.constant dense<0.000000e+00> : vector<8x8xf32>
    %49 = tpu.matmul %46, %47, %cst_22 {dimension_numbers = #tpu.dot_dimension_numbers<[1], [1], [0], [0], [0, 0, 1, 0], [], []>} : vector<8x8xf32>, vector<8x8xf32>, vector<8x8xf32> -> vector<8x8xf32>
    %cst_23 = arith.constant dense<0xFF800000> : vector<8xf32>
    %50 = vector.multi_reduction <maximumf>, %49, %cst_23 [1] : vector<8x8xf32> to vector<8xf32>
    %51 = vector.shape_cast %50 : vector<8xf32> to vector<8x1xf32>
    %52 = vector.broadcast %51 : vector<8x1xf32> to vector<8x8xf32>
    %53 = arith.subf %49, %52 : vector<8x8xf32>
    %54 = math.exp %53 : vector<8x8xf32>
    %cst_24 = arith.constant dense<0.000000e+00> : vector<8xf32>
    %55 = vector.multi_reduction <add>, %54, %cst_24 [1] : vector<8x8xf32> to vector<8xf32>
    %56 = vector.shape_cast %55 : vector<8xf32> to vector<8x1xf32>
    %cst_25 = arith.constant 1.000000e+00 : f32
    %57 = vector.broadcast %cst_25 : f32 to vector<8x1xf32>
    %58 = arith.divf %57, %56 : vector<8x1xf32>
    %59 = vector.broadcast %58 : vector<8x1xf32> to vector<8x8xf32>
    %60 = arith.mulf %54, %59 : vector<8x8xf32>
    %cst_26 = arith.constant dense<0.000000e+00> : vector<8x8xf32>
    %61 = tpu.matmul %60, %48, %cst_26 {dimension_numbers = #tpu.dot_dimension_numbers<[1], [0], [0], [1], [0, 0, 1, 1], [], []>} : vector<8x8xf32>, vector<8x8xf32>, vector<8x8xf32> -> vector<8x8xf32>
    %62 = vector.extract_strided_slice %11 {offsets = [0, 24], sizes = [8, 8], strides = [1, 1]} : vector<8x32xf32> to vector<8x8xf32>
    %63 = vector.extract_strided_slice %12 {offsets = [0, 24], sizes = [8, 8], strides = [1, 1]} : vector<8x32xf32> to vector<8x8xf32>
    %64 = vector.extract_strided_slice %13 {offsets = [0, 24], sizes = [8, 8], strides = [1, 1]} : vector<8x32xf32> to vector<8x8xf32>
    %cst_27 = arith.constant dense<0.000000e+00> : vector<8x8xf32>
    %65 = tpu.matmul %62, %63, %cst_27 {dimension_numbers = #tpu.dot_dimension_numbers<[1], [1], [0], [0], [0, 0, 1, 0], [], []>} : vector<8x8xf32>, vector<8x8xf32>, vector<8x8xf32> -> vector<8x8xf32>
    %cst_28 = arith.constant dense<0xFF800000> : vector<8xf32>
    %66 = vector.multi_reduction <maximumf>, %65, %cst_28 [1] : vector<8x8xf32> to vector<8xf32>
    %67 = vector.shape_cast %66 : vector<8xf32> to vector<8x1xf32>
    %68 = vector.broadcast %67 : vector<8x1xf32> to vector<8x8xf32>
    %69 = arith.subf %65, %68 : vector<8x8xf32>
    %70 = math.exp %69 : vector<8x8xf32>
    %cst_29 = arith.constant dense<0.000000e+00> : vector<8xf32>
    %71 = vector.multi_reduction <add>, %70, %cst_29 [1] : vector<8x8xf32> to vector<8xf32>
    %72 = vector.shape_cast %71 : vector<8xf32> to vector<8x1xf32>
    %cst_30 = arith.constant 1.000000e+00 : f32
    %73 = vector.broadcast %cst_30 : f32 to vector<8x1xf32>
    %74 = arith.divf %73, %72 : vector<8x1xf32>
    %75 = vector.broadcast %74 : vector<8x1xf32> to vector<8x8xf32>
    %76 = arith.mulf %70, %75 : vector<8x8xf32>
    %cst_31 = arith.constant dense<0.000000e+00> : vector<8x8xf32>
    %77 = tpu.matmul %76, %64, %cst_31 {dimension_numbers = #tpu.dot_dimension_numbers<[1], [0], [0], [1], [0, 0, 1, 1], [], []>} : vector<8x8xf32>, vector<8x8xf32>, vector<8x8xf32> -> vector<8x8xf32>
    %78 = tpu.concatenate %29, %45, %61, %77 in 1 : vector<8x8xf32>, vector<8x8xf32>, vector<8x8xf32>, vector<8x8xf32> -> vector<8x32xf32>
    %c0_32 = arith.constant 0 : index
    %c0_33 = arith.constant 0 : index
    %79 = vector.load %arg11[%c0_32, %c0_33] : memref<32x32xf32, #tpu.memory_space<vmem>>, vector<32x32xf32>
    %cst_34 = arith.constant dense<0.000000e+00> : vector<8x32xf32>
    %80 = tpu.matmul %78, %79, %cst_34 {dimension_numbers = #tpu.dot_dimension_numbers<[1], [0], [0], [1], [0, 0, 1, 1], [], []>} : vector<8x32xf32>, vector<32x32xf32>, vector<8x32xf32> -> vector<8x32xf32>
    %c0_35 = arith.constant 0 : index
    %c0_36 = arith.constant 0 : index
    %81 = vector.load %arg12[%c0_35, %c0_36] : memref<1x32xf32, #tpu.memory_space<vmem>>, vector<1x32xf32>
    %82 = vector.broadcast %81 : vector<1x32xf32> to vector<8x32xf32>
    %83 = arith.addf %80, %82 : vector<8x32xf32>
    %c0_37 = arith.constant 0 : index
    %c0_38 = arith.constant 0 : index
    %c0_39 = arith.constant 0 : index
    %84 = vector.load %arg13[%c0_37, %c0_38, %c0_39] : memref<1x8x32xf32, #tpu.memory_space<vmem>>, vector<1x8x32xf32>
    %85 = vector.shape_cast %84 : vector<1x8x32xf32> to vector<8x32xf32>
    %86 = vector.shape_cast %83 : vector<8x32xf32> to vector<1x8x32xf32>
    tpu.vector_store %arg13[%c0_37, %c0_38, %c0_39], %86 {strides = array<i32>} : memref<1x8x32xf32, #tpu.memory_space<vmem>>, vector<1x8x32xf32>,
    return
  }
  func.func @transform_0(%arg0: i32, %arg1: i32) -> (i32, i32, i32) {
    %c0_i32 = arith.constant 0 : i32
    %c0_i32_0 = arith.constant 0 : i32
    return %arg0, %arg1, %c0_i32 : i32, i32, i32
  }
  func.func @transform_1(%arg0: i32, %arg1: i32) -> (i32, i32, i32) {
    %c0_i32 = arith.constant 0 : i32
    %c0_i32_0 = arith.constant 0 : i32
    %c0_i32_1 = arith.constant 0 : i32
    return %arg0, %c0_i32, %c0_i32_0 : i32, i32, i32
  }
  func.func @transform_2(%arg0: i32, %arg1: i32) -> (i32, i32, i32) {
    %c0_i32 = arith.constant 0 : i32
    %c0_i32_0 = arith.constant 0 : i32
    %c0_i32_1 = arith.constant 0 : i32
    return %arg0, %c0_i32, %c0_i32_0 : i32, i32, i32
  }
  func.func @transform_3(%arg0: i32, %arg1: i32) -> (i32, i32) {
    %c0_i32 = arith.constant 0 : i32
    %c0_i32_0 = arith.constant 0 : i32
    %c0_i32_1 = arith.constant 0 : i32
    return %c0_i32, %c0_i32_0 : i32, i32
  }
  func.func @transform_4(%arg0: i32, %arg1: i32) -> (i32, i32) {
    %c0_i32 = arith.constant 0 : i32
    %c0_i32_0 = arith.constant 0 : i32
    %c0_i32_1 = arith.constant 0 : i32
    return %c0_i32, %c0_i32_0 : i32, i32
  }
  func.func @transform_5(%arg0: i32, %arg1: i32) -> (i32, i32) {
    %c0_i32 = arith.constant 0 : i32
    %c0_i32_0 = arith.constant 0 : i32
    %c0_i32_1 = arith.constant 0 : i32
    return %c0_i32, %c0_i32_0 : i32, i32
  }
  func.func @transform_6(%arg0: i32, %arg1: i32) -> (i32, i32) {
    %c0_i32 = arith.constant 0 : i32
    %c0_i32_0 = arith.constant 0 : i32
    %c0_i32_1 = arith.constant 0 : i32
    return %c0_i32, %c0_i32_0 : i32, i32
  }
  func.func @transform_7(%arg0: i32, %arg1: i32) -> (i32, i32) {
    %c0_i32 = arith.constant 0 : i32
    %c0_i32_0 = arith.constant 0 : i32
    %c0_i32_1 = arith.constant 0 : i32
    return %c0_i32, %c0_i32_0 : i32, i32
  }
  func.func @transform_8(%arg0: i32, %arg1: i32) -> (i32, i32) {
    %c0_i32 = arith.constant 0 : i32
    %c0_i32_0 = arith.constant 0 : i32
    %c0_i32_1 = arith.constant 0 : i32
    return %c0_i32, %c0_i32_0 : i32, i32
  }
  func.func @transform_9(%arg0: i32, %arg1: i32) -> (i32, i32) {
    %c0_i32 = arith.constant 0 : i32
    %c0_i32_0 = arith.constant 0 : i32
    %c0_i32_1 = arith.constant 0 : i32
    return %c0_i32, %c0_i32_0 : i32, i32
  }
  func.func @transform_10(%arg0: i32, %arg1: i32) -> (i32, i32) {
    %c0_i32 = arith.constant 0 : i32
    %c0_i32_0 = arith.constant 0 : i32
    %c0_i32_1 = arith.constant 0 : i32
    return %c0_i32, %c0_i32_0 : i32, i32
  }
  func.func @transform_11(%arg0: i32, %arg1: i32) -> (i32, i32, i32) {
    %c0_i32 = arith.constant 0 : i32
    %c0_i32_0 = arith.constant 0 : i32
    return %arg0, %arg1, %c0_i32 : i32, i32, i32
  }
}

</mosaic_0001>

<llo_original>
// kernel: tpu_custom_call.1
$region0: #{tpu_custom_call.1}
  #allocation0 [shape = 'u32[]', space=smem, size = 0x4, offset = 0x4, fixed_abs, tag = 'smem constant byte address 0x4 - core index']
  #allocation1 [shape = 'u32[72,128]{1,0:T(1,128)}', space=vmem, size = 0x9000, scoped, tag = 'internal scratch']
  #allocation2 [shape = 'f32[8,32]{1,0:T(8,128)}', space=vmem, size = 0x1000, scoped, tag = 'scratch operand']
  #allocation3 [shape = 'f32[8,32]{1,0:T(8,128)}', space=vmem, size = 0x1000, scoped, tag = 'scratch operand']
  %s0 = inlined_call_operand.hbm [shape: f32[2,8,32], index: 0, kind: input, shape index: {}]
  %s1 = inlined_call_operand.hbm [shape: f32[2,8,32], index: 1, kind: input, shape index: {}]
  %s2 = inlined_call_operand.hbm [shape: f32[2,8,32], index: 2, kind: input, shape index: {}]
  %s3 = inlined_call_operand.hbm [shape: f32[32,32], index: 3, kind: input, shape index: {}]
  %s4 = inlined_call_operand.vmem [shape: f32[1,32], index: 4, kind: input, shape index: {}]
  %s5 = inlined_call_operand.hbm [shape: f32[32,32], index: 5, kind: input, shape index: {}]
  %s6 = inlined_call_operand.vmem [shape: f32[1,32], index: 6, kind: input, shape index: {}]
  %s7 = inlined_call_operand.hbm [shape: f32[32,32], index: 7, kind: input, shape index: {}]
  %s8 = inlined_call_operand.vmem [shape: f32[1,32], index: 8, kind: input, shape index: {}]
  %s9 = inlined_call_operand.hbm [shape: f32[32,32], index: 9, kind: input, shape index: {}]
  %s10 = inlined_call_operand.vmem [shape: f32[1,32], index: 10, kind: input, shape index: {}]
  %s11 = inlined_call_operand.hbm [shape: f32[2,8,32], index: 11, kind: output, shape index: {}]
  %s12 = sld [smem:[#allocation0]]
  $region109: #{tpu_custom_call.1} parent=0
    _
  %s14 = ssub.s32 1, %s12
  %s15 = scalar_select 0, %s14, %s12
  $region1: #{tpu_custom_call.1} parent=0
    #allocation4 [shape = 'u8[8192]{0}', space=vmem, size = 0x2000, scoped, tag = 'input window, operand 0']
    #allocation5 [shape = 's32[2]{0}', space=sflag, size = 0x8, scoped, tag = 'scoped memory for tpu_custom_call.1']
    #allocation6 [shape = 's32[2]{0}', space=sflag, size = 0x8, scoped, tag = 'scoped memory for tpu_custom_call.1']
    #allocation7 [shape = 'u8[8192]{0}', space=vmem, size = 0x2000, scoped, tag = 'input window, operand 1']
    #allocation8 [shape = 's32[2]{0}', space=sflag, size = 0x8, scoped, tag = 'scoped memory for tpu_custom_call.1']
    #allocation9 [shape = 'u8[8192]{0}', space=vmem, size = 0x2000, scoped, tag = 'input window, operand 2']
    #allocation10 [shape = 'u8[16384]{0}', space=vmem, size = 0x4000, scoped, tag = 'input window, operand 3, single buffered']
    #allocation11 [shape = 's32[1]{0}', space=sflag, size = 0x4, scoped, tag = 'scoped memory for tpu_custom_call.1']
    #allocation12 [shape = 'u8[16384]{0}', space=vmem, size = 0x4000, scoped, tag = 'input window, operand 5, single buffered']
    #allocation13 [shape = 'u8[16384]{0}', space=vmem, size = 0x4000, scoped, tag = 'input window, operand 7, single buffered']
    #allocation14 [shape = 's32[1]{0}', space=sflag, size = 0x4, scoped, tag = 'scoped memory for tpu_custom_call.1']
    #allocation15 [shape = 'u8[16384]{0}', space=vmem, size = 0x4000, scoped, tag = 'input window, operand 9, single buffered']
    #allocation16 [shape = 'u8[8192]{0}', space=vmem, size = 0x2000, scoped, tag = 'output window, operand 0']
    %16 = vsyncpa [#allocation5], 0
    %s17 = scalar_lea.sflag [#allocation5], 1
    %18 = vsyncpa %s17, 0
    %19 = vsyncpa [#allocation8], 0
    %s20 = scalar_lea.sflag [#allocation8], 1
    %21 = vsyncpa %s20, 0
    %22 = vsyncpa [#allocation11], 0
    %23 = vsyncpa [#allocation14], 0
    %24 = vsyncpa [#allocation6], 0
    %s25 = scalar_lea.sflag [#allocation6], 1
    %26 = vsyncpa %s25, 0
    loop: start=0, step=1, limit=4
    $region2: #{tpu_custom_call.1} parent=1 // loop_pre_header
      _
    $region3: #{tpu_custom_call.1} parent=1 // loop_header
      %s28 = sphi 0, %s32
      %p29 = scmp.ge.s32.totalorder %s28, 4
      %s35 = sphi 0, %s47
      %s36 = sphi 0, %s43
      %s37 = sphi 0, %s35
      %s38 = sphi 0, %s36
      %s39 = sphi 0, %s37
      %s40 = sphi 0, %s38
      %s52 = sphi 0, %s54
      %s55 = sphi 0, %s52
      %s56 = sphi 0, %s55
      %s72 = sphi 0, %s56
      %s78 = sphi 0, %s80
      %s81 = sphi 0, %s78
      %s82 = sphi 0, %s81
      %s98 = sphi 0, %s82
      %s104 = sphi 0, %s106
      %s107 = sphi 0, %s104
      %s108 = sphi 0, %s107
      %s124 = sphi 0, %s108
      %s128 = sphi 0, %s128
      %s130 = sphi 0, %s128
      %s131 = sphi 0, %s130
      %s145 = sphi 0, %s131
      %s149 = sphi 0, %s149
      %s151 = sphi 0, %s149
      %s152 = sphi 0, %s151
      %s166 = sphi 0, %s152
      %s170 = sphi 0, %s170
      %s172 = sphi 0, %s170
      %s173 = sphi 0, %s172
      %s187 = sphi 0, %s173
      %s191 = sphi 0, %s191
      %s193 = sphi 0, %s191
      %s194 = sphi 0, %s193
      %s208 = sphi 0, %s194
      %s212 = sphi 0, %s212
      %s214 = sphi 0, %s212
      %s215 = sphi 0, %s214
      %s229 = sphi 0, %s215
      %s233 = sphi 0, %s233
      %s235 = sphi 0, %s233
      %s236 = sphi 0, %s235
      %s250 = sphi 0, %s236
      %s254 = sphi 0, %s254
      %s256 = sphi 0, %s254
      %s257 = sphi 0, %s256
      %s271 = sphi 0, %s257
      %s275 = sphi 0, %s275
      %s277 = sphi 0, %s275
      %s278 = sphi 0, %s277
      %s292 = sphi 0, %s278
      %s300 = sphi 0, %s302
      %s303 = sphi 0, %s300
      %s304 = sphi 0, %s303
      %s320 = sphi 0, %s304
    $region4: #{tpu_custom_call.1} parent=1 // loop_header_branch
      %31 = sbr.rel (%p29) target = $region8
    $region5: #{tpu_custom_call.1} parent=1 // loop_body
      %s33 = ssub.s32 %s28, 1
      %s34 = ssub.s32 %s28, 2
      %s41 = sadd.s32 1, %s36
      %p42 = scmp.ge.s32.totalorder %s41, 1
      %s43 = scalar_select %p42, 0, %s41
      %s44 = sadd.s32 1, %s35
      %s45 = scalar_select %p42, %s44, %s35
      %p46 = scmp.ge.s32.totalorder %s45, 2
      %s47 = scalar_select %p46, 0, %s45
      %s48 = ssub.s32 %s35, %s47
      %s49 = ssub.s32 %s36, %s43
      %s50 = sor.u32 %s48, %s49
      %p51 = scmp.eq.s32.totalorder %s50, 0
      %s53 = sadd.s32 %s52, 1
      %s54 = scalar_select %p51, %s52, %s53
      %p57 = pneg %p51
      %p58 = scmp.eq.s32.totalorder %s28, 1
      %p59 = por %p57, %p58
      %p60 = scmp.ne.s32.totalorder %s52, %s55
      %p61 = scmp.eq.s32.totalorder %s28, 0
      %p62 = por %p60, %p61
      %p63 = scmp.ne.s32.totalorder %s52, %s55
      %p64 = scmp.eq.s32.totalorder %s33, 1
      %p65 = por %p63, %p64
      %p66 = scmp.ne.s32.totalorder %s55, %s56
      %p67 = scmp.eq.s32.totalorder %s33, 0
      %p68 = por %p66, %p67
      %p69 = scmp.ne.s32.totalorder %s55, %s56
      %p70 = scmp.eq.s32.totalorder %s34, 1
      %p71 = por %p69, %p70
      %p73 = scmp.ne.s32.totalorder %s56, %s72
      %p74 = scmp.eq.s32.totalorder %s34, 0
      %p75 = por %p73, %p74
      %s76 = ssub.s32 %s35, %s47
      %p77 = scmp.eq.s32.totalorder %s76, 0
      %s79 = sadd.s32 %s78, 1
      %s80 = scalar_select %p77, %s78, %s79
      %p83 = pneg %p77
      %p84 = scmp.eq.s32.totalorder %s28, 1
      %p85 = por %p83, %p84
      %p86 = scmp.ne.s32.totalorder %s78, %s81
      %p87 = scmp.eq.s32.totalorder %s28, 0
      %p88 = por %p86, %p87
      %p89 = scmp.ne.s32.totalorder %s78, %s81
      %p90 = scmp.eq.s32.totalorder %s33, 1
      %p91 = por %p89, %p90
      %p92 = scmp.ne.s32.totalorder %s81, %s82
      %p93 = scmp.eq.s32.totalorder %s33, 0
      %p94 = por %p92, %p93
      %p95 = scmp.ne.s32.totalorder %s81, %s82
      %p96 = scmp.eq.s32.totalorder %s34, 1
      %p97 = por %p95, %p96
      %p99 = scmp.ne.s32.totalorder %s82, %s98
      %p100 = scmp.eq.s32.totalorder %s34, 0
      %p101 = por %p99, %p100
      %s102 = ssub.s32 %s35, %s47
      %p103 = scmp.eq.s32.totalorder %s102, 0
      %s105 = sadd.s32 %s104, 1
      %s106 = scalar_select %p103, %s104, %s105
      %p109 = pneg %p103
      %p110 = scmp.eq.s32.totalorder %s28, 1
      %p111 = por %p109, %p110
      %p112 = scmp.ne.s32.totalorder %s104, %s107
      %p113 = scmp.eq.s32.totalorder %s28, 0
      %p114 = por %p112, %p113
      %p115 = scmp.ne.s32.totalorder %s104, %s107
      %p116 = scmp.eq.s32.totalorder %s33, 1
      %p117 = por %p115, %p116
      %p118 = scmp.ne.s32.totalorder %s107, %s108
      %p119 = scmp.eq.s32.totalorder %s33, 0
      %p120 = por %p118, %p119
      %p121 = scmp.ne.s32.totalorder %s107, %s108
      %p122 = scmp.eq.s32.totalorder %s34, 1
      %p123 = por %p121, %p122
      %p125 = scmp.ne.s32.totalorder %s108, %s124
      %p126 = scmp.eq.s32.totalorder %s34, 0
      %p127 = por %p125, %p126
      %s129 = sadd.s32 %s128, 1
      %p132 = scmp.eq.s32.totalorder %s28, 1
      %p133 = scmp.ne.s32.totalorder %s128, %s130
      %p134 = scmp.eq.s32.totalorder %s28, 0
      %p135 = por %p133, %p134
      %p136 = scmp.ne.s32.totalorder %s128, %s130
      %p137 = scmp.eq.s32.totalorder %s33, 1
      %p138 = por %p136, %p137
      %p139 = scmp.ne.s32.totalorder %s130, %s131
      %p140 = scmp.eq.s32.totalorder %s33, 0
      %p141 = por %p139, %p140
      %p142 = scmp.ne.s32.totalorder %s130, %s131
      %p143 = scmp.eq.s32.totalorder %s34, 1
      %p144 = por %p142, %p143
      %p146 = scmp.ne.s32.totalorder %s131, %s145
      %p147 = scmp.eq.s32.totalorder %s34, 0
      %p148 = por %p146, %p147
      %s150 = sadd.s32 %s149, 1
      %p153 = scmp.eq.s32.totalorder %s28, 1
      %p154 = scmp.ne.s32.totalorder %s149, %s151
      %p155 = scmp.eq.s32.totalorder %s28, 0
      %p156 = por %p154, %p155
      %p157 = scmp.ne.s32.totalorder %s149, %s151
      %p158 = scmp.eq.s32.totalorder %s33, 1
      %p159 = por %p157, %p158
      %p160 = scmp.ne.s32.totalorder %s151, %s152
      %p161 = scmp.eq.s32.totalorder %s33, 0
      %p162 = por %p160, %p161
      %p163 = scmp.ne.s32.totalorder %s151, %s152
      %p164 = scmp.eq.s32.totalorder %s34, 1
      %p165 = por %p163, %p164
      %p167 = scmp.ne.s32.totalorder %s152, %s166
      %p168 = scmp.eq.s32.totalorder %s34, 0
      %p169 = por %p167, %p168
      %s171 = sadd.s32 %s170, 1
      %p174 = scmp.eq.s32.totalorder %s28, 1
      %p175 = scmp.ne.s32.totalorder %s170, %s172
      %p176 = scmp.eq.s32.totalorder %s28, 0
      %p177 = por %p175, %p176
      %p178 = scmp.ne.s32.totalorder %s170, %s172
      %p179 = scmp.eq.s32.totalorder %s33, 1
      %p180 = por %p178, %p179
      %p181 = scmp.ne.s32.totalorder %s172, %s173
      %p182 = scmp.eq.s32.totalorder %s33, 0
      %p183 = por %p181, %p182
      %p184 = scmp.ne.s32.totalorder %s172, %s173
      %p185 = scmp.eq.s32.totalorder %s34, 1
      %p186 = por %p184, %p185
      %p188 = scmp.ne.s32.totalorder %s173, %s187
      %p189 = scmp.eq.s32.totalorder %s34, 0
      %p190 = por %p188, %p189
      %s192 = sadd.s32 %s191, 1
      %p195 = scmp.eq.s32.totalorder %s28, 1
      %p196 = scmp.ne.s32.totalorder %s191, %s193
      %p197 = scmp.eq.s32.totalorder %s28, 0
      %p198 = por %p196, %p197
      %p199 = scmp.ne.s32.totalorder %s191, %s193
      %p200 = scmp.eq.s32.totalorder %s33, 1
      %p201 = por %p199, %p200
      %p202 = scmp.ne.s32.totalorder %s193, %s194
      %p203 = scmp.eq.s32.totalorder %s33, 0
      %p204 = por %p202, %p203
      %p205 = scmp.ne.s32.totalorder %s193, %s194
      %p206 = scmp.eq.s32.totalorder %s34, 1
      %p207 = por %p205, %p206
      %p209 = scmp.ne.s32.totalorder %s194, %s208
      %p210 = scmp.eq.s32.totalorder %s34, 0
      %p211 = por %p209, %p210
      %s213 = sadd.s32 %s212, 1
      %p216 = scmp.eq.s32.totalorder %s28, 1
      %p217 = scmp.ne.s32.totalorder %s212, %s214
      %p218 = scmp.eq.s32.totalorder %s28, 0
      %p219 = por %p217, %p218
      %p220 = scmp.ne.s32.totalorder %s212, %s214
      %p221 = scmp.eq.s32.totalorder %s33, 1
      %p222 = por %p220, %p221
      %p223 = scmp.ne.s32.totalorder %s214, %s215
      %p224 = scmp.eq.s32.totalorder %s33, 0
      %p225 = por %p223, %p224
      %p226 = scmp.ne.s32.totalorder %s214, %s215
      %p227 = scmp.eq.s32.totalorder %s34, 1
      %p228 = por %p226, %p227
      %p230 = scmp.ne.s32.totalorder %s215, %s229
      %p231 = scmp.eq.s32.totalorder %s34, 0
      %p232 = por %p230, %p231
      %s234 = sadd.s32 %s233, 1
      %p237 = scmp.eq.s32.totalorder %s28, 1
      %p238 = scmp.ne.s32.totalorder %s233, %s235
      %p239 = scmp.eq.s32.totalorder %s28, 0
      %p240 = por %p238, %p239
      %p241 = scmp.ne.s32.totalorder %s233, %s235
      %p242 = scmp.eq.s32.totalorder %s33, 1
      %p243 = por %p241, %p242
      %p244 = scmp.ne.s32.totalorder %s235, %s236
      %p245 = scmp.eq.s32.totalorder %s33, 0
      %p246 = por %p244, %p245
      %p247 = scmp.ne.s32.totalorder %s235, %s236
      %p248 = scmp.eq.s32.totalorder %s34, 1
      %p249 = por %p247, %p248
      %p251 = scmp.ne.s32.totalorder %s236, %s250
      %p252 = scmp.eq.s32.totalorder %s34, 0
      %p253 = por %p251, %p252
      %s255 = sadd.s32 %s254, 1
      %p258 = scmp.eq.s32.totalorder %s28, 1
      %p259 = scmp.ne.s32.totalorder %s254, %s256
      %p260 = scmp.eq.s32.totalorder %s28, 0
      %p261 = por %p259, %p260
      %p262 = scmp.ne.s32.totalorder %s254, %s256
      %p263 = scmp.eq.s32.totalorder %s33, 1
      %p264 = por %p262, %p263
      %p265 = scmp.ne.s32.totalorder %s256, %s257
      %p266 = scmp.eq.s32.totalorder %s33, 0
      %p267 = por %p265, %p266
      %p268 = scmp.ne.s32.totalorder %s256, %s257
      %p269 = scmp.eq.s32.totalorder %s34, 1
      %p270 = por %p268, %p269
      %p272 = scmp.ne.s32.totalorder %s257, %s271
      %p273 = scmp.eq.s32.totalorder %s34, 0
      %p274 = por %p272, %p273
      %s276 = sadd.s32 %s275, 1
      %p279 = scmp.eq.s32.totalorder %s28, 1
      %p280 = scmp.ne.s32.totalorder %s275, %s277
      %p281 = scmp.eq.s32.totalorder %s28, 0
      %p282 = por %p280, %p281
      %p283 = scmp.ne.s32.totalorder %s275, %s277
      %p284 = scmp.eq.s32.totalorder %s33, 1
      %p285 = por %p283, %p284
      %p286 = scmp.ne.s32.totalorder %s277, %s278
      %p287 = scmp.eq.s32.totalorder %s33, 0
      %p288 = por %p286, %p287
      %p289 = scmp.ne.s32.totalorder %s277, %s278
      %p290 = scmp.eq.s32.totalorder %s34, 1
      %p291 = por %p289, %p290
      %p293 = scmp.ne.s32.totalorder %s278, %s292
      %p294 = scmp.eq.s32.totalorder %s34, 0
      %p295 = por %p293, %p294
      %s296 = ssub.s32 %s35, %s47
      %s297 = ssub.s32 %s36, %s43
      %s298 = sor.u32 %s296, %s297
      %p299 = scmp.eq.s32.totalorder %s298, 0
      %s301 = sadd.s32 %s300, 1
      %s302 = scalar_select %p299, %s300, %s301
      %p305 = pneg %p299
      %p306 = scmp.eq.s32.totalorder %s28, 1
      %p307 = por %p305, %p306
      %p308 = scmp.ne.s32.totalorder %s300, %s303
      %p309 = scmp.eq.s32.totalorder %s28, 0
      %p310 = por %p308, %p309
      %p311 = scmp.ne.s32.totalorder %s300, %s303
      %p312 = scmp.eq.s32.totalorder %s33, 1
      %p313 = por %p311, %p312
      %p314 = scmp.ne.s32.totalorder %s303, %s304
      %p315 = scmp.eq.s32.totalorder %s33, 0
      %p316 = por %p314, %p315
      %p317 = scmp.ne.s32.totalorder %s303, %s304
      %p318 = scmp.eq.s32.totalorder %s34, 1
      %p319 = por %p317, %p318
      %p321 = scmp.ne.s32.totalorder %s304, %s320
      %p322 = scmp.eq.s32.totalorder %s34, 0
      %p323 = por %p321, %p322
      %p324 = scmp.le.s32.totalorder 1, %s28
      %p325 = scmp.lt.s32.totalorder %s28, 3
      %p326 = pnand %p324, %p325
      %p327 = pneg %p326
      // Predicated region
      $region9: #{tpu_custom_call.1} parent=5 // pred_check
        _
      $region10: #{tpu_custom_call.1} parent=5 // pred_check_branch
        %329 = sbr.rel (%p326) target = $region12
      $region11: #{tpu_custom_call.1} parent=5 // pred_region
        %s330 = ssub.s32 %s28, 1
        // Predicated region
        $region13: #{tpu_custom_call.1} parent=11 // pred_check
          %p331 = pneg %p141
        $region14: #{tpu_custom_call.1} parent=11 // pred_check_branch
          %333 = sbr.rel (%p331) target = $region16
        $region15: #{tpu_custom_call.1} parent=11 // pred_region
          %335 = vsyncadd [#allocation11], 0
          %s336 = sshll.u32 %s3, 4
          %s337 = int_to_ptr.hbm [resolvable:$true] %s336
          %s338 = sshll.u32 [#allocation10], 4
          %s339 = int_to_ptr.vmem [resolvable:$true] %s338
          %344 = dma.hbm_to_vmem [thread:$0]  %s337, 512, %s339, [#allocation11], 128, 128, 8
        $region16: #{tpu_custom_call.1} parent=11 // pred_fallthru
          _
        // Predicated region
        $region17: #{tpu_custom_call.1} parent=11 // pred_check
          %p345 = pneg %p162
        $region18: #{tpu_custom_call.1} parent=11 // pred_check_branch
          %347 = sbr.rel (%p345) target = $region20
        $region19: #{tpu_custom_call.1} parent=11 // pred_region
          _
        $region20: #{tpu_custom_call.1} parent=11 // pred_fallthru
          _
        // Predicated region
        $region21: #{tpu_custom_call.1} parent=11 // pred_check
          %p348 = pneg %p183
        $region22: #{tpu_custom_call.1} parent=11 // pred_check_branch
          %350 = sbr.rel (%p348) target = $region24
        $region23: #{tpu_custom_call.1} parent=11 // pred_region
          %352 = vsyncadd [#allocation11], 0
          %s353 = sshll.u32 %s5, 4
          %s354 = int_to_ptr.hbm [resolvable:$true] %s353
          %s355 = sshll.u32 [#allocation12], 4
          %s356 = int_to_ptr.vmem [resolvable:$true] %s355
          %361 = dma.hbm_to_vmem [thread:$0]  %s354, 512, %s356, [#allocation11], 128, 128, 8
        $region24: #{tpu_custom_call.1} parent=11 // pred_fallthru
          _
        // Predicated region
        $region25: #{tpu_custom_call.1} parent=11 // pred_check
          %p362 = pneg %p204
        $region26: #{tpu_custom_call.1} parent=11 // pred_check_branch
          %364 = sbr.rel (%p362) target = $region28
        $region27: #{tpu_custom_call.1} parent=11 // pred_region
          _
        $region28: #{tpu_custom_call.1} parent=11 // pred_fallthru
          _
        // Predicated region
        $region29: #{tpu_custom_call.1} parent=11 // pred_check
          %p365 = pneg %p225
        $region30: #{tpu_custom_call.1} parent=11 // pred_check_branch
          %367 = sbr.rel (%p365) target = $region32
        $region31: #{tpu_custom_call.1} parent=11 // pred_region
          %369 = vsyncadd [#allocation14], 0
          %s370 = sshll.u32 %s7, 4
          %s371 = int_to_ptr.hbm [resolvable:$true] %s370
          %s372 = sshll.u32 [#allocation13], 4
          %s373 = int_to_ptr.vmem [resolvable:$true] %s372
          %378 = dma.hbm_to_vmem [thread:$0]  %s371, 512, %s373, [#allocation14], 128, 128, 8
        $region32: #{tpu_custom_call.1} parent=11 // pred_fallthru
          _
        // Predicated region
        $region33: #{tpu_custom_call.1} parent=11 // pred_check
          %p379 = pneg %p246
        $region34: #{tpu_custom_call.1} parent=11 // pred_check_branch
          %381 = sbr.rel (%p379) target = $region36
        $region35: #{tpu_custom_call.1} parent=11 // pred_region
          _
        $region36: #{tpu_custom_call.1} parent=11 // pred_fallthru
          _
        // Predicated region
        $region37: #{tpu_custom_call.1} parent=11 // pred_check
          %p382 = pneg %p267
        $region38: #{tpu_custom_call.1} parent=11 // pred_check_branch
          %384 = sbr.rel (%p382) target = $region40
        $region39: #{tpu_custom_call.1} parent=11 // pred_region
          %386 = vsyncadd [#allocation14], 0
          %s387 = sshll.u32 %s9, 4
          %s388 = int_to_ptr.hbm [resolvable:$true] %s387
          %s389 = sshll.u32 [#allocation15], 4
          %s390 = int_to_ptr.vmem [resolvable:$true] %s389
          %395 = dma.hbm_to_vmem [thread:$0]  %s388, 512, %s390, [#allocation14], 128, 128, 8
        $region40: #{tpu_custom_call.1} parent=11 // pred_fallthru
          _
        // Predicated region
        $region41: #{tpu_custom_call.1} parent=11 // pred_check
          %p396 = pneg %p288
        $region42: #{tpu_custom_call.1} parent=11 // pred_check_branch
          %398 = sbr.rel (%p396) target = $region44
        $region43: #{tpu_custom_call.1} parent=11 // pred_region
          _
        $region44: #{tpu_custom_call.1} parent=11 // pred_fallthru
          _
      $region12: #{tpu_custom_call.1} parent=5 // pred_fallthru
        _
      %p399 = scmp.lt.s32.totalorder %s28, 2
      // Predicated region
      $region45: #{tpu_custom_call.1} parent=5 // pred_check
        %p400 = pneg %p399
      $region46: #{tpu_custom_call.1} parent=5 // pred_check_branch
        %402 = sbr.rel (%p400) target = $region48
      $region47: #{tpu_custom_call.1} parent=5 // pred_region
        // Predicated region
        $region49: #{tpu_custom_call.1} parent=47 // pred_check
          %p403 = pneg %p62
        $region50: #{tpu_custom_call.1} parent=47 // pred_check_branch
          %405 = sbr.rel (%p403) target = $region52
        $region51: #{tpu_custom_call.1} parent=47 // pred_region
          %s406 = sand.u32 %s52, 1
          %s407 = scalar_lea.sflag [#allocation5], %s406
          %s408 = sand.u32 %s52, 1
          %s409 = smul.addr %s408, 8
          %s410 = scalar_lea.vmem [#allocation4], %s409
          %412 = vsyncadd %s407, 0
          %s413 = sadd.s32 %s36, %s35
          %s414 = smul.addr %s413, 8
          %s415 = scalar_lea.hbm %s0, %s414
          %s417 = sshll.u32 %s415, 4
          %s418 = int_to_ptr.hbm [resolvable:$true] %s417
          %s419 = sshll.u32 %s410, 4
          %s420 = int_to_ptr.vmem [resolvable:$true] %s419
          %422 = dma.hbm_to_vmem [thread:$0]  %s418, 128, %s420, %s407
        $region52: #{tpu_custom_call.1} parent=47 // pred_fallthru
          _
        // Predicated region
        $region53: #{tpu_custom_call.1} parent=47 // pred_check
          %p423 = pneg %p88
        $region54: #{tpu_custom_call.1} parent=47 // pred_check_branch
          %425 = sbr.rel (%p423) target = $region56
        $region55: #{tpu_custom_call.1} parent=47 // pred_region
          %s426 = sand.u32 %s28, 1
          %s427 = scalar_lea.sflag [#allocation8], %s426
          %s428 = sand.u32 %s78, 1
          %s429 = smul.addr %s428, 8
          %s430 = scalar_lea.vmem [#allocation7], %s429
          %432 = vsyncadd %s427, 0
          %s433 = smul.addr %s35, 8
          %s434 = scalar_lea.hbm %s1, %s433
          %s436 = sshll.u32 %s434, 4
          %s437 = int_to_ptr.hbm [resolvable:$true] %s436
          %s438 = sshll.u32 %s430, 4
          %s439 = int_to_ptr.vmem [resolvable:$true] %s438
          %441 = dma.hbm_to_vmem [thread:$0]  %s437, 128, %s439, %s427
        $region56: #{tpu_custom_call.1} parent=47 // pred_fallthru
          _
        // Predicated region
        $region57: #{tpu_custom_call.1} parent=47 // pred_check
          %p442 = pneg %p114
        $region58: #{tpu_custom_call.1} parent=47 // pred_check_branch
          %444 = sbr.rel (%p442) target = $region60
        $region59: #{tpu_custom_call.1} parent=47 // pred_region
          %s445 = sand.u32 %s28, 1
          %s446 = scalar_lea.sflag [#allocation8], %s445
          %s447 = sand.u32 %s104, 1
          %s448 = smul.addr %s447, 8
          %s449 = scalar_lea.vmem [#allocation9], %s448
          %451 = vsyncadd %s446, 0
          %s452 = smul.addr %s35, 8
          %s453 = scalar_lea.hbm %s2, %s452
          %s455 = sshll.u32 %s453, 4
          %s456 = int_to_ptr.hbm [resolvable:$true] %s455
          %s457 = sshll.u32 %s449, 4
          %s458 = int_to_ptr.vmem [resolvable:$true] %s457
          %460 = dma.hbm_to_vmem [thread:$0]  %s456, 128, %s458, %s446
        $region60: #{tpu_custom_call.1} parent=47 // pred_fallthru
          _
      $region48: #{tpu_custom_call.1} parent=5 // pred_fallthru
        _
      %p461 = scmp.le.s32.totalorder 1, %s28
      %p462 = scmp.lt.s32.totalorder %s28, 3
      %p463 = pnand %p461, %p462
      %p464 = pneg %p463
      // Predicated region
      $region61: #{tpu_custom_call.1} parent=5 // pred_check
        _
      $region62: #{tpu_custom_call.1} parent=5 // pred_check_branch
        %466 = sbr.rel (%p463) target = $region64
      $region63: #{tpu_custom_call.1} parent=5 // pred_region
        %s467 = ssub.s32 %s28, 1
        %s468 = sand.u32 %s55, 1
        %s469 = scalar_lea.sflag [#allocation5], %s468
        %s470 = sand.u32 %s55, 1
        %s471 = smul.addr %s470, 8
        %s472 = scalar_lea.vmem [#allocation4], %s471
        // Predicated region
        $region65: #{tpu_custom_call.1} parent=63 // pred_check
          %p473 = pneg %p68
        $region66: #{tpu_custom_call.1} parent=63 // pred_check_branch
          %475 = sbr.rel (%p473) target = $region68
        $region67: #{tpu_custom_call.1} parent=63 // pred_region
          %477 = dma.done %s469, 128
        $region68: #{tpu_custom_call.1} parent=63 // pred_fallthru
          _
        %s478 = sand.u32 %s33, 1
        %s479 = scalar_lea.sflag [#allocation8], %s478
        %s480 = sand.u32 %s81, 1
        %s481 = smul.addr %s480, 8
        %s482 = scalar_lea.vmem [#allocation7], %s481
        // Predicated region
        $region69: #{tpu_custom_call.1} parent=63 // pred_check
          %p483 = pneg %p94
        $region70: #{tpu_custom_call.1} parent=63 // pred_check_branch
          %485 = sbr.rel (%p483) target = $region72
        $region71: #{tpu_custom_call.1} parent=63 // pred_region
          %487 = dma.done %s479, 128
        $region72: #{tpu_custom_call.1} parent=63 // pred_fallthru
          _
        %s488 = sand.u32 %s33, 1
        %s489 = scalar_lea.sflag [#allocation8], %s488
        %s490 = sand.u32 %s107, 1
        %s491 = smul.addr %s490, 8
        %s492 = scalar_lea.vmem [#allocation9], %s491
        // Predicated region
        $region73: #{tpu_custom_call.1} parent=63 // pred_check
          %p493 = pneg %p120
        $region74: #{tpu_custom_call.1} parent=63 // pred_check_branch
          %495 = sbr.rel (%p493) target = $region76
        $region75: #{tpu_custom_call.1} parent=63 // pred_region
          %497 = dma.done %s489, 128
        $region76: #{tpu_custom_call.1} parent=63 // pred_fallthru
          _
        // Predicated region
        $region77: #{tpu_custom_call.1} parent=63 // pred_check
          %p498 = pneg %p141
        $region78: #{tpu_custom_call.1} parent=63 // pred_check_branch
          %500 = sbr.rel (%p498) target = $region80
        $region79: #{tpu_custom_call.1} parent=63 // pred_region
          %502 = dma.done [#allocation11], 512
        $region80: #{tpu_custom_call.1} parent=63 // pred_fallthru
          _
        // Predicated region
        $region81: #{tpu_custom_call.1} parent=63 // pred_check
          %p503 = pneg %p183
        $region82: #{tpu_custom_call.1} parent=63 // pred_check_branch
          %505 = sbr.rel (%p503) target = $region84
        $region83: #{tpu_custom_call.1} parent=63 // pred_region
          %507 = dma.done [#allocation11], 512
        $region84: #{tpu_custom_call.1} parent=63 // pred_fallthru
          _
        // Predicated region
        $region85: #{tpu_custom_call.1} parent=63 // pred_check
          %p508 = pneg %p225
        $region86: #{tpu_custom_call.1} parent=63 // pred_check_branch
          %510 = sbr.rel (%p508) target = $region88
        $region87: #{tpu_custom_call.1} parent=63 // pred_region
          %512 = dma.done [#allocation14], 512
        $region88: #{tpu_custom_call.1} parent=63 // pred_fallthru
          _
        // Predicated region
        $region89: #{tpu_custom_call.1} parent=63 // pred_check
          %p513 = pneg %p267
        $region90: #{tpu_custom_call.1} parent=63 // pred_check_branch
          %515 = sbr.rel (%p513) target = $region92
        $region91: #{tpu_custom_call.1} parent=63 // pred_region
          %517 = dma.done [#allocation14], 512
        $region92: #{tpu_custom_call.1} parent=63 // pred_fallthru
          _
        %s518 = sand.u32 %s55, 1
        %s519 = scalar_lea.sflag [#allocation5], %s518
        %s520 = sand.u32 %s55, 1
        %s521 = smul.addr %s520, 8
        %s522 = scalar_lea.vmem [#allocation4], %s521
        %p523 = pneg %p68
        %p524 = pneg %p65
        %s525 = sand.u32 %s33, 1
        %s526 = scalar_lea.sflag [#allocation8], %s525
        %s527 = sand.u32 %s81, 1
        %s528 = smul.addr %s527, 8
        %s529 = scalar_lea.vmem [#allocation7], %s528
        %p530 = pneg %p94
        %p531 = pneg %p91
        %s532 = sand.u32 %s33, 1
        %s533 = scalar_lea.sflag [#allocation8], %s532
        %s534 = sand.u32 %s107, 1
        %s535 = smul.addr %s534, 8
        %s536 = scalar_lea.vmem [#allocation9], %s535
        %p537 = pneg %p120
        %p538 = pneg %p117
        %p539 = pneg %p141
        %p540 = pneg %p138
        %p541 = pneg %p162
        %p542 = pneg %p159
        %p543 = pneg %p183
        %p544 = pneg %p180
        %p545 = pneg %p204
        %p546 = pneg %p201
        %p547 = pneg %p225
        %p548 = pneg %p222
        %p549 = pneg %p246
        %p550 = pneg %p243
        %p551 = pneg %p267
        %p552 = pneg %p264
        %p553 = pneg %p288
        %p554 = pneg %p285
        %p555 = pneg %p316
        %p556 = pneg %p313
        %s557 = sand.u32 %s303, 1
        %s558 = scalar_lea.sflag [#allocation6], %s557
        %s559 = sand.u32 %s303, 1
        %s560 = smul.addr %s559, 8
        %s561 = scalar_lea.vmem [#allocation16], %s560
        %p562 = scmp.eq.s32.totalorder %s38, 0
        // Predicated region
        $region93: #{tpu_custom_call.1} parent=63 // pred_check
          %p563 = pneg %p562
        $region94: #{tpu_custom_call.1} parent=63 // pred_check_branch
          %565 = sbr.rel (%p563) target = $region96
        $region95: #{tpu_custom_call.1} parent=63 // pred_region
          %v566 = vld [vmem:[%s482] sm:$0xff]
          %v567 = vld [vmem:[%s492] sm:$0xff]
          %v568 = vld [vmem:[#allocation12] sm:$0xff]
          %v569 = vld [vmem:[#allocation12 + $0x8] sm:$0xff]
          %v570 = vld [vmem:[#allocation12 + $0x10] sm:$0xff]
          %v571 = vld [vmem:[#allocation12 + $0x18] sm:$0xff]
          %v572 = vld [vmem:[%s6] sm:$0x1]
          %v574 = vperm.slane %v572, 0
          %vm576 = vcmask 261120
          %v578 = vsel %vm576, %v566, 0
          %580 = vmatpush.msra.mxu0 0.0
          %581 = vmatpush.msra.mxu0 0.0
          %582 = vmatpush.msra.mxu0 0.0
          %583 = vmatpush.msra.mxu0 0.0
          %584 = vmatpush.msra.mxu0 0.0
          %585 = vmatpush.msra.mxu0 0.0
          %586 = vmatpush.msra.mxu0 0.0
          %587 = vmatpush.msra.mxu0 0.0
          %588 = vmatpush.msra.mxu0 0.0
          %589 = vmatpush.msra.mxu0 0.0
          %590 = vmatpush.msra.mxu0 0.0
          %591 = vmatpush.msra.mxu0 0.0
          %592 = vmatpush.msra.mxu0 %v571
          %593 = vmatpush.msra.mxu0 %v570
          %594 = vmatpush.msra.mxu0 %v569
          %595 = vmatpush.msra.mxu0 %v568
          %596 = vmatmul.f32.gmra.mxu0 %v578
          %v597 = vpop.f32.mrf.mxu0
          %v598 = vadd.f32 %v574, %v597
          %599 = vdwg.mxu0
          %600 = vst.msk [vmem:[#allocation2] sm:$0xff] %vm576, %v598
          %v601 = vld [vmem:[#allocation13] sm:$0xff]
          %v602 = vld [vmem:[#allocation13 + $0x8] sm:$0xff]
          %v603 = vld [vmem:[#allocation13 + $0x10] sm:$0xff]
          %v604 = vld [vmem:[#allocation13 + $0x18] sm:$0xff]
          %v605 = vld [vmem:[%s8] sm:$0x1]
          %v607 = vperm.slane %v605, 0
          %v610 = vsel %vm576, %v567, 0
          %612 = vmatpush.msra.mxu0 0.0
          %613 = vmatpush.msra.mxu0 0.0
          %614 = vmatpush.msra.mxu0 0.0
          %615 = vmatpush.msra.mxu0 0.0
          %616 = vmatpush.msra.mxu0 0.0
          %617 = vmatpush.msra.mxu0 0.0
          %618 = vmatpush.msra.mxu0 0.0
          %619 = vmatpush.msra.mxu0 0.0
          %620 = vmatpush.msra.mxu0 0.0
          %621 = vmatpush.msra.mxu0 0.0
          %622 = vmatpush.msra.mxu0 0.0
          %623 = vmatpush.msra.mxu0 0.0
          %624 = vmatpush.msra.mxu0 %v604
          %625 = vmatpush.msra.mxu0 %v603
          %626 = vmatpush.msra.mxu0 %v602
          %627 = vmatpush.msra.mxu0 %v601
          %628 = vmatmul.f32.gmra.mxu0 %v610
          %v629 = vpop.f32.mrf.mxu0
          %v630 = vadd.f32 %v607, %v629
          %631 = vdwg.mxu0
          %632 = vst.msk [vmem:[#allocation3] sm:$0xff] %vm576, %v630
        $region96: #{tpu_custom_call.1} parent=63 // pred_fallthru
          _
        %v633 = vld [vmem:[%s472] sm:$0xff]
        %v634 = vld [vmem:[#allocation10] sm:$0xff]
        %v635 = vld [vmem:[#allocation10 + $0x8] sm:$0xff]
        %v636 = vld [vmem:[#allocation10 + $0x10] sm:$0xff]
        %v637 = vld [vmem:[#allocation10 + $0x18] sm:$0xff]
        %v638 = vld [vmem:[%s4] sm:$0x1]
        %v640 = vperm.slane %v638, 0
        %vm642 = vcmask 261120
        %v644 = vsel %vm642, %v633, 0
        %646 = vmatpush.msra.mxu0 0.0
        %647 = vmatpush.msra.mxu0 0.0
        %648 = vmatpush.msra.mxu0 0.0
        %649 = vmatpush.msra.mxu0 0.0
        %650 = vmatpush.msra.mxu0 0.0
        %651 = vmatpush.msra.mxu0 0.0
        %652 = vmatpush.msra.mxu0 0.0
        %653 = vmatpush.msra.mxu0 0.0
        %654 = vmatpush.msra.mxu0 0.0
        %655 = vmatpush.msra.mxu0 0.0
        %656 = vmatpush.msra.mxu0 0.0
        %657 = vmatpush.msra.mxu0 0.0
        %658 = vmatpush.msra.mxu0 %v637
        %659 = vmatpush.msra.mxu0 %v636
        %660 = vmatpush.msra.mxu0 %v635
        %661 = vmatpush.msra.mxu0 %v634
        %662 = vmatmul.f32.gmra.mxu0 %v644
        %v663 = vpop.f32.mrf.mxu0
        %v664 = vadd.f32 %v640, %v663
        %665 = vdwg.mxu0
        %v666 = vmul.f32 %v664, 0.17677669
        %v667 = vld [vmem:[#allocation2] sm:$0xff]
        %v668 = vld [vmem:[#allocation3] sm:$0xff]
        %vm669 = vcmask 64512
        %v671 = vsel %vm669, %v666, 0
        %v674 = vsel %vm669, %v667, 0
        %676 = vmatpush.xpose.msra.mxu0 0.0
        %677 = vmatpush.xpose.msra.mxu0 0.0
        %678 = vmatpush.xpose.msra.mxu0 0.0
        %679 = vmatpush.xpose.msra.mxu0 0.0
        %680 = vmatpush.xpose.msra.mxu0 0.0
        %681 = vmatpush.xpose.msra.mxu0 0.0
        %682 = vmatpush.xpose.msra.mxu0 0.0
        %683 = vmatpush.xpose.msra.mxu0 0.0
        %684 = vmatpush.xpose.msra.mxu0 0.0
        %685 = vmatpush.xpose.msra.mxu0 0.0
        %686 = vmatpush.xpose.msra.mxu0 0.0
        %687 = vmatpush.xpose.msra.mxu0 0.0
        %688 = vmatpush.xpose.msra.mxu0 0.0
        %689 = vmatpush.xpose.msra.mxu0 0.0
        %690 = vmatpush.xpose.msra.mxu0 0.0
        %691 = vmatpush.xpose.msra.mxu0 %v674
        %692 = vmatmul.f32.gmra.mxu0 %v671
        %v693 = vpop.f32.mrf.mxu0
        %v694 = vadd.f32 0.0, %v693
        %695 = vdwg.mxu0
        %v696 = vsel %vm669, %v694, -inf
        %697 = vmax.xlane.f32.xlu0 %v696
        %v698 = vpop.xlane.xlu0 %697
        %v699 = vsub.f32 %v694, %v698
        %v700 = vmul.f32 %v699, 1.442695
        %v701 = vpow.pop %v700
        %v702 = vsel %vm669, %v701, 0.0
        %703 = vadd.xlane.f32.xlu0 %v702
        %v704 = vpop.xlane.xlu0 %703
        %v705 = vrcp.pop %v704
        %v706 = vmul.f32 %v704, %v705
        %v707 = vsub.f32 1.0, %v706
        %v708 = vmul.f32 %v705, %v707
        %v709 = vadd.f32 %v705, %v708
        %vm710 = vweird.f32 %v704
        %vm711 = vweird.f32 %v705
        %vm712 = vmor %vm710, %vm711
        %v713 = vsel %vm712, %v705, %v709
        %v714 = vand.u32 2147483647, %v704
        %vm715 = vcmp.eq.f32.partialorder %v714, 8.507059e+37
        %v716 = vand.u32 %v704, 2147483648
        %v717 = vor.u32 1.1754944e-38, %v716
        %v718 = vsel %vm715, %v717, %v713
        %v719 = vmul.f32 1.0, %v718
        %v720 = vmul.f32 %v701, %v719
        %v722 = vsel %vm669, %v720, 0
        %724 = vmatpush.msra.mxu0 0.0
        %725 = vmatpush.msra.mxu0 0.0
        %726 = vmatpush.msra.mxu0 0.0
        %727 = vmatpush.msra.mxu0 0.0
        %728 = vmatpush.msra.mxu0 0.0
        %729 = vmatpush.msra.mxu0 0.0
        %730 = vmatpush.msra.mxu0 0.0
        %731 = vmatpush.msra.mxu0 0.0
        %732 = vmatpush.msra.mxu0 0.0
        %733 = vmatpush.msra.mxu0 0.0
        %734 = vmatpush.msra.mxu0 0.0
        %735 = vmatpush.msra.mxu0 0.0
        %736 = vmatpush.msra.mxu0 0.0
        %737 = vmatpush.msra.mxu0 0.0
        %738 = vmatpush.msra.mxu0 0.0
        %739 = vmatpush.msra.mxu0 %v668
        %740 = vmatmul.f32.gmra.mxu0 %v722
        %v741 = vpop.f32.mrf.mxu0
        %v742 = vadd.f32 0.0, %v741
        %743 = vdwg.mxu0
        %744 = vrot.lane.b32.xlu0 %v666, 120
        %v745 = vpop.permute.xlu0 %744
        %746 = vrot.lane.b32.xlu0 %v667, 120
        %v747 = vpop.permute.xlu0 %746
        %v748 = vsel %vm669, %v745, 0
        %v750 = vsel %vm669, %v747, 0
        %752 = vmatpush.xpose.msra.mxu0 0.0
        %753 = vmatpush.xpose.msra.mxu0 0.0
        %754 = vmatpush.xpose.msra.mxu0 0.0
        %755 = vmatpush.xpose.msra.mxu0 0.0
        %756 = vmatpush.xpose.msra.mxu0 0.0
        %757 = vmatpush.xpose.msra.mxu0 0.0
        %758 = vmatpush.xpose.msra.mxu0 0.0
        %759 = vmatpush.xpose.msra.mxu0 0.0
        %760 = vmatpush.xpose.msra.mxu0 0.0
        %761 = vmatpush.xpose.msra.mxu0 0.0
        %762 = vmatpush.xpose.msra.mxu0 0.0
        %763 = vmatpush.xpose.msra.mxu0 0.0
        %764 = vmatpush.xpose.msra.mxu0 0.0
        %765 = vmatpush.xpose.msra.mxu0 0.0
        %766 = vmatpush.xpose.msra.mxu0 0.0
        %767 = vmatpush.xpose.msra.mxu0 %v750
        %768 = vmatmul.f32.gmra.mxu0 %v748
        %v769 = vpop.f32.mrf.mxu0
        %v770 = vadd.f32 0.0, %v769
        %771 = vdwg.mxu0
        %v772 = vsel %vm669, %v770, -inf
        %773 = vmax.xlane.f32.xlu0 %v772
        %v774 = vpop.xlane.xlu0 %773
        %v775 = vsub.f32 %v770, %v774
        %v776 = vmul.f32 %v775, 1.442695
        %v777 = vpow.pop %v776
        %v778 = vsel %vm669, %v777, 0.0
        %779 = vadd.xlane.f32.xlu0 %v778
        %v780 = vpop.xlane.xlu0 %779
        %v781 = vrcp.pop %v780
        %v782 = vmul.f32 %v780, %v781
        %v783 = vsub.f32 1.0, %v782
        %v784 = vmul.f32 %v781, %v783
        %v785 = vadd.f32 %v781, %v784
        %vm786 = vweird.f32 %v780
        %vm787 = vweird.f32 %v781
        %vm788 = vmor %vm786, %vm787
        %v789 = vsel %vm788, %v781, %v785
        %v790 = vand.u32 2147483647, %v780
        %vm791 = vcmp.eq.f32.partialorder %v790, 8.507059e+37
        %v792 = vand.u32 %v780, 2147483648
        %v793 = vor.u32 1.1754944e-38, %v792
        %v794 = vsel %vm791, %v793, %v789
        %v795 = vmul.f32 1.0, %v794
        %v796 = vmul.f32 %v777, %v795
        %798 = vrot.lane.b32.xlu0 %v668, 120
        %v799 = vpop.permute.xlu0 %798
        %v802 = vsel %vm669, %v796, 0
        %804 = vmatpush.msra.mxu0 0.0
        %805 = vmatpush.msra.mxu0 0.0
        %806 = vmatpush.msra.mxu0 0.0
        %807 = vmatpush.msra.mxu0 0.0
        %808 = vmatpush.msra.mxu0 0.0
        %809 = vmatpush.msra.mxu0 0.0
        %810 = vmatpush.msra.mxu0 0.0
        %811 = vmatpush.msra.mxu0 0.0
        %812 = vmatpush.msra.mxu0 0.0
        %813 = vmatpush.msra.mxu0 0.0
        %814 = vmatpush.msra.mxu0 0.0
        %815 = vmatpush.msra.mxu0 0.0
        %816 = vmatpush.msra.mxu0 0.0
        %817 = vmatpush.msra.mxu0 0.0
        %818 = vmatpush.msra.mxu0 0.0
        %819 = vmatpush.msra.mxu0 %v799
        %820 = vmatmul.f32.gmra.mxu0 %v802
        %v821 = vpop.f32.mrf.mxu0
        %v822 = vadd.f32 0.0, %v821
        %823 = vdwg.mxu0
        %824 = vrot.lane.b32.xlu0 %v666, 112
        %v825 = vpop.permute.xlu0 %824
        %826 = vrot.lane.b32.xlu0 %v667, 112
        %v827 = vpop.permute.xlu0 %826
        %v828 = vsel %vm669, %v825, 0
        %v830 = vsel %vm669, %v827, 0
        %832 = vmatpush.xpose.msra.mxu0 0.0
        %833 = vmatpush.xpose.msra.mxu0 0.0
        %834 = vmatpush.xpose.msra.mxu0 0.0
        %835 = vmatpush.xpose.msra.mxu0 0.0
        %836 = vmatpush.xpose.msra.mxu0 0.0
        %837 = vmatpush.xpose.msra.mxu0 0.0
        %838 = vmatpush.xpose.msra.mxu0 0.0
        %839 = vmatpush.xpose.msra.mxu0 0.0
        %840 = vmatpush.xpose.msra.mxu0 0.0
        %841 = vmatpush.xpose.msra.mxu0 0.0
        %842 = vmatpush.xpose.msra.mxu0 0.0
        %843 = vmatpush.xpose.msra.mxu0 0.0
        %844 = vmatpush.xpose.msra.mxu0 0.0
        %845 = vmatpush.xpose.msra.mxu0 0.0
        %846 = vmatpush.xpose.msra.mxu0 0.0
        %847 = vmatpush.xpose.msra.mxu0 %v830
        %848 = vmatmul.f32.gmra.mxu0 %v828
        %v849 = vpop.f32.mrf.mxu0
        %v850 = vadd.f32 0.0, %v849
        %851 = vdwg.mxu0
        %v852 = vsel %vm669, %v850, -inf
        %853 = vmax.xlane.f32.xlu0 %v852
        %v854 = vpop.xlane.xlu0 %853
        %v855 = vsub.f32 %v850, %v854
        %v856 = vmul.f32 %v855, 1.442695
        %v857 = vpow.pop %v856
        %v858 = vsel %vm669, %v857, 0.0
        %859 = vadd.xlane.f32.xlu0 %v858
        %v860 = vpop.xlane.xlu0 %859
        %v861 = vrcp.pop %v860
        %v862 = vmul.f32 %v860, %v861
        %v863 = vsub.f32 1.0, %v862
        %v864 = vmul.f32 %v861, %v863
        %v865 = vadd.f32 %v861, %v864
        %vm866 = vweird.f32 %v860
        %vm867 = vweird.f32 %v861
        %vm868 = vmor %vm866, %vm867
        %v869 = vsel %vm868, %v861, %v865
        %v870 = vand.u32 2147483647, %v860
        %vm871 = vcmp.eq.f32.partialorder %v870, 8.507059e+37
        %v872 = vand.u32 %v860, 2147483648
        %v873 = vor.u32 1.1754944e-38, %v872
        %v874 = vsel %vm871, %v873, %v869
        %v875 = vmul.f32 1.0, %v874
        %v876 = vmul.f32 %v857, %v875
        %877 = vrot.lane.b32.xlu0 %v668, 112
        %v878 = vpop.permute.xlu0 %877
        %v881 = vsel %vm669, %v876, 0
        %883 = vmatpush.msra.mxu0 0.0
        %884 = vmatpush.msra.mxu0 0.0
        %885 = vmatpush.msra.mxu0 0.0
        %886 = vmatpush.msra.mxu0 0.0
        %887 = vmatpush.msra.mxu0 0.0
        %888 = vmatpush.msra.mxu0 0.0
        %889 = vmatpush.msra.mxu0 0.0
        %890 = vmatpush.msra.mxu0 0.0
        %891 = vmatpush.msra.mxu0 0.0
        %892 = vmatpush.msra.mxu0 0.0
        %893 = vmatpush.msra.mxu0 0.0
        %894 = vmatpush.msra.mxu0 0.0
        %895 = vmatpush.msra.mxu0 0.0
        %896 = vmatpush.msra.mxu0 0.0
        %897 = vmatpush.msra.mxu0 0.0
        %898 = vmatpush.msra.mxu0 %v878
        %899 = vmatmul.f32.gmra.mxu0 %v881
        %v900 = vpop.f32.mrf.mxu0
        %v901 = vadd.f32 0.0, %v900
        %902 = vdwg.mxu0
        %903 = vrot.lane.b32.xlu0 %v666, 104
        %v904 = vpop.permute.xlu0 %903
        %905 = vrot.lane.b32.xlu0 %v667, 104
        %v906 = vpop.permute.xlu0 %905
        %v907 = vsel %vm669, %v904, 0
        %v909 = vsel %vm669, %v906, 0
        %911 = vmatpush.xpose.msra.mxu0 0.0
        %912 = vmatpush.xpose.msra.mxu0 0.0
        %913 = vmatpush.xpose.msra.mxu0 0.0
        %914 = vmatpush.xpose.msra.mxu0 0.0
        %915 = vmatpush.xpose.msra.mxu0 0.0
        %916 = vmatpush.xpose.msra.mxu0 0.0
        %917 = vmatpush.xpose.msra.mxu0 0.0
        %918 = vmatpush.xpose.msra.mxu0 0.0
        %919 = vmatpush.xpose.msra.mxu0 0.0
        %920 = vmatpush.xpose.msra.mxu0 0.0
        %921 = vmatpush.xpose.msra.mxu0 0.0
        %922 = vmatpush.xpose.msra.mxu0 0.0
        %923 = vmatpush.xpose.msra.mxu0 0.0
        %924 = vmatpush.xpose.msra.mxu0 0.0
        %925 = vmatpush.xpose.msra.mxu0 0.0
        %926 = vmatpush.xpose.msra.mxu0 %v909
        %927 = vmatmul.f32.gmra.mxu0 %v907
        %v928 = vpop.f32.mrf.mxu0
        %v929 = vadd.f32 0.0, %v928
        %930 = vdwg.mxu0
        %v931 = vsel %vm669, %v929, -inf
        %932 = vmax.xlane.f32.xlu0 %v931
        %v933 = vpop.xlane.xlu0 %932
        %v934 = vsub.f32 %v929, %v933
        %v935 = vmul.f32 %v934, 1.442695
        %v936 = vpow.pop %v935
        %v937 = vsel %vm669, %v936, 0.0
        %938 = vadd.xlane.f32.xlu0 %v937
        %v939 = vpop.xlane.xlu0 %938
        %v940 = vrcp.pop %v939
        %v941 = vmul.f32 %v939, %v940
        %v942 = vsub.f32 1.0, %v941
        %v943 = vmul.f32 %v940, %v942
        %v944 = vadd.f32 %v940, %v943
        %vm945 = vweird.f32 %v939
        %vm946 = vweird.f32 %v940
        %vm947 = vmor %vm945, %vm946
        %v948 = vsel %vm947, %v940, %v944
        %v949 = vand.u32 2147483647, %v939
        %vm950 = vcmp.eq.f32.partialorder %v949, 8.507059e+37
        %v951 = vand.u32 %v939, 2147483648
        %v952 = vor.u32 1.1754944e-38, %v951
        %v953 = vsel %vm950, %v952, %v948
        %v954 = vmul.f32 1.0, %v953
        %v955 = vmul.f32 %v936, %v954
        %956 = vrot.lane.b32.xlu0 %v668, 104
        %v957 = vpop.permute.xlu0 %956
        %v960 = vsel %vm669, %v955, 0
        %962 = vmatpush.msra.mxu0 0.0
        %963 = vmatpush.msra.mxu0 0.0
        %964 = vmatpush.msra.mxu0 0.0
        %965 = vmatpush.msra.mxu0 0.0
        %966 = vmatpush.msra.mxu0 0.0
        %967 = vmatpush.msra.mxu0 0.0
        %968 = vmatpush.msra.mxu0 0.0
        %969 = vmatpush.msra.mxu0 0.0
        %970 = vmatpush.msra.mxu0 0.0
        %971 = vmatpush.msra.mxu0 0.0
        %972 = vmatpush.msra.mxu0 0.0
        %973 = vmatpush.msra.mxu0 0.0
        %974 = vmatpush.msra.mxu0 0.0
        %975 = vmatpush.msra.mxu0 0.0
        %976 = vmatpush.msra.mxu0 0.0
        %977 = vmatpush.msra.mxu0 %v957
        %978 = vmatmul.f32.gmra.mxu0 %v960
        %v979 = vpop.f32.mrf.mxu0
        %v980 = vadd.f32 0.0, %v979
        %981 = vdwg.mxu0
        %983 = vrot.lane.b32.xlu0 %v822, 8
        %v984 = vpop.permute.xlu0 %983
        %987 = vrot.lane.b32.xlu0 %v901, 16
        %v988 = vpop.permute.xlu0 %987
        %991 = vrot.lane.b32.xlu0 %v980, 24
        %v992 = vpop.permute.xlu0 %991
        %v994 = vsel %vm669, %v742, %v984
        %vm995 = vcmask 130048
        %v996 = vsel %vm995, %v994, %v988
        %vm997 = vcmask 195584
        %v998 = vsel %vm997, %v996, %v992
        %v999 = vld [vmem:[#allocation15] sm:$0xff]
        %v1000 = vld [vmem:[#allocation15 + $0x8] sm:$0xff]
        %v1001 = vld [vmem:[#allocation15 + $0x10] sm:$0xff]
        %v1002 = vld [vmem:[#allocation15 + $0x18] sm:$0xff]
        %v1003 = vld [vmem:[%s10] sm:$0x1]
        %v1005 = vperm.slane %v1003, 0
        %v1008 = vsel %vm642, %v998, 0
        %1010 = vmatpush.msra.mxu0 0.0
        %1011 = vmatpush.msra.mxu0 0.0
        %1012 = vmatpush.msra.mxu0 0.0
        %1013 = vmatpush.msra.mxu0 0.0
        %1014 = vmatpush.msra.mxu0 0.0
        %1015 = vmatpush.msra.mxu0 0.0
        %1016 = vmatpush.msra.mxu0 0.0
        %1017 = vmatpush.msra.mxu0 0.0
        %1018 = vmatpush.msra.mxu0 0.0
        %1019 = vmatpush.msra.mxu0 0.0
        %1020 = vmatpush.msra.mxu0 0.0
        %1021 = vmatpush.msra.mxu0 0.0
        %1022 = vmatpush.msra.mxu0 %v1002
        %1023 = vmatpush.msra.mxu0 %v1001
        %1024 = vmatpush.msra.mxu0 %v1000
        %1025 = vmatpush.msra.mxu0 %v999
        %1026 = vmatmul.f32.gmra.mxu0 %v1008
        %v1027 = vpop.f32.mrf.mxu0
        %v1028 = vadd.f32 %v1005, %v1027
        %1029 = vdwg.mxu0
        %1030 = vst.msk [vmem:[%s561] sm:$0xff] %vm642, %v1028
        %s1031 = sand.u32 %s303, 1
        %s1032 = scalar_lea.sflag [#allocation6], %s1031
        %s1033 = sand.u32 %s303, 1
        %s1034 = smul.addr %s1033, 8
        %s1035 = scalar_lea.vmem [#allocation16], %s1034
        // Predicated region
        $region97: #{tpu_custom_call.1} parent=63 // pred_check
          %p1036 = pneg %p313
        $region98: #{tpu_custom_call.1} parent=63 // pred_check_branch
          %1038 = sbr.rel (%p1036) target = $region100
        $region99: #{tpu_custom_call.1} parent=63 // pred_region
          %1040 = vsyncadd %s1032, 0
          %s1041 = sadd.s32 %s38, %s37
          %s1042 = smul.addr %s1041, 8
          %s1043 = scalar_lea.hbm %s11, %s1042
          %s1045 = sshll.u32 %s1035, 4
          %s1046 = int_to_ptr.vmem [resolvable:$true] %s1045
          %s1047 = sshll.u32 %s1043, 4
          %s1048 = int_to_ptr.hbm [resolvable:$true] %s1047
          %1050 = dma.vmem_to_hbm [thread:$0]  %s1046, 128, %s1048, %s1032
        $region100: #{tpu_custom_call.1} parent=63 // pred_fallthru
          _
      $region64: #{tpu_custom_call.1} parent=5 // pred_fallthru
        _
      %p1051 = scmp.le.s32.totalorder 2, %s28
      // Predicated region
      $region101: #{tpu_custom_call.1} parent=5 // pred_check
        %p1052 = pneg %p1051
      $region102: #{tpu_custom_call.1} parent=5 // pred_check_branch
        %1054 = sbr.rel (%p1052) target = $region104
      $region103: #{tpu_custom_call.1} parent=5 // pred_region
        %s1055 = ssub.s32 %s28, 2
        // Predicated region
        $region105: #{tpu_custom_call.1} parent=103 // pred_check
          %p1056 = pneg %p319
        $region106: #{tpu_custom_call.1} parent=103 // pred_check_branch
          %1058 = sbr.rel (%p1056) target = $region108
        $region107: #{tpu_custom_call.1} parent=103 // pred_region
          %s1059 = sand.u32 %s304, 1
          %s1060 = scalar_lea.sflag [#allocation6], %s1059
          %s1061 = sand.u32 %s304, 1
          %s1062 = smul.addr %s1061, 8
          %s1063 = scalar_lea.vmem [#allocation16], %s1062
          %1065 = dma.done %s1060, 128
        $region108: #{tpu_custom_call.1} parent=103 // pred_fallthru
          _
      $region104: #{tpu_custom_call.1} parent=5 // pred_fallthru
        _
    $region6: #{tpu_custom_call.1} parent=1 // loop_footer
      %s32 = sadd.s32 1, %s28
    $region7: #{tpu_custom_call.1} parent=1 // loop_footer_branch
      %27 = sbr.rel target = $region3
    $region8: #{tpu_custom_call.1} parent=1 // loop_exit
      _
    %1066 = vsyncpa [#allocation5], 1
    %s1067 = scalar_lea.sflag [#allocation5], 1
    %1068 = vsyncpa %s1067, 1
    %1069 = vsyncpa [#allocation8], 1
    %s1070 = scalar_lea.sflag [#allocation8], 1
    %1071 = vsyncpa %s1070, 1
    %1072 = vsyncpa [#allocation11], 1
    %1073 = vsyncpa [#allocation14], 1
    %1074 = vsyncpa [#allocation6], 1
    %s1075 = scalar_lea.sflag [#allocation6], 1
    %1076 = vsyncpa %s1075, 1

</llo_original>
